<compile_context>
chip_gen: v7x
topology: tpu7x:2x2x1
jax: 0.10.0
libtpu: 0.0.40
codegen_flags: <defaults>
</compile_context>

<pallas_src>
import jax
import jax.numpy as jnp
from jax import lax
from jax.experimental import pallas as pl
from jax.experimental.pallas import tpu as pltpu


def _fused_kernel(p_ref, w1_ref, b1_ref, w2_ref, b2_ref, o_ref):
    # p_ref : (1, K, 4*L)  bf16   (columns ordered parity-major, then image, then spatial)
    # w1_ref: (C1, K) f32   b1_ref: (C1, 1) f32
    # w2_ref: (NC, C1) f32  b2_ref: (NC, 1) f32
    # o_ref : (1, NC, L) f32
    pt = p_ref[0].astype(jnp.float32)                                   # (K, 4L)
    L = pt.shape[1] // 4

    # conv1 (3x3, pad=1) over all 4 parities and BN images as ONE MXU matmul (transposed form)
    y = jnp.dot(w1_ref[...], pt, preferred_element_type=jnp.float32)    # (C1, 4L)

    # MaxPool2d(2,2) == elementwise max over the 4 pooling-window parities
    # (static slices at 128-lane-aligned boundaries -> no relayout)
    pooled = jnp.maximum(jnp.maximum(y[:, 0 * L:1 * L], y[:, 1 * L:2 * L]),
                         jnp.maximum(y[:, 2 * L:3 * L], y[:, 3 * L:4 * L]))  # (C1, L)

    # bias + ReLU hoisted past the max (exact: both are monotone)
    h = jnp.maximum(pooled + b1_ref[...], 0.0)                           # (C1, L)

    # 1x1 out_conv as matmul: out^T = W2 @ h  (+ bias)
    out = jnp.dot(w2_ref[...], h, preferred_element_type=jnp.float32) + b2_ref[...]
    o_ref[0] = out.astype(o_ref.dtype)                                   # (NC, L) lane-dense store


def simple_conv_linear_net_mnist(x, w1, b1, w2, b2, *, block_n=8):
    """x: (N, Cin, H, W) NCHW float32. Returns (N, n_classes, H//2, W//2) NCHW float32."""
    N, Cin, H, W = x.shape
    assert H % 2 == 0 and W % 2 == 0, "even spatial dims assumed (matches MaxPool2d floor here)"
    C1 = w1.shape[0]              # base_channels
    NC = w2.shape[0]              # n_classes
    Hh, Wh = H // 2, W // 2
    HW2 = Hh * Wh
    K = Cin * 9

    # --- batch tiling: BN images per grid step (pad N up to a multiple of BN) ---
    BN = min(block_n, N)
    Np = ((N + BN - 1) // BN) * BN
    if Np != N:
        x = jnp.pad(x, ((0, Np - N), (0, 0), (0, 0), (0, 0)))
    Nb = Np // BN
    L = BN * HW2                  # lane dim of pooled/output tiles (multiple of 128 for BN even, H=W=16)

    # --- glue: im2col of the zero-padded input; feature order (ci, kh, kw) matches
    #           PyTorch's weight.reshape(C1, Cin*3*3) flattening.
    xp = jnp.pad(x, ((0, 0), (0, 0), (1, 1), (1, 1)))
    cols = jnp.stack(
        [xp[:, :, kh:kh + H, kw:kw + W] for kh in range(3) for kw in range(3)],
        axis=2,
    )                                             # (Np, Cin, 9, H, W)
    cols = cols.reshape(Np, K, H, W)

    # --- glue: split conv-output positions by 2x2 pooling-window parity -> (Np, K, 4, Hh*Wh)
    T = jnp.stack(
        [cols[:, :, a::2, b::2].reshape(Np, K, HW2) for a in range(2) for b in range(2)],
        axis=2,
    )

    # --- glue: group batch into tiles of BN; columns ordered (parity, image-in-tile, spatial)
    PT = (T.reshape(Nb, BN, K, 4, HW2)
            .transpose(0, 2, 3, 1, 4)             # (Nb, K, 4, BN, HW2)
            .reshape(Nb, K, 4 * L)
            .astype(jnp.bfloat16))                # halve patch DMA bytes; math stays f32 in-kernel

    w1m = w1.reshape(C1, K).astype(jnp.float32)   # (C1, K)
    b1m = b1.reshape(C1, 1).astype(jnp.float32)
    w2m = w2.reshape(NC, C1).astype(jnp.float32)  # (NC, C1)
    b2m = b2.reshape(NC, 1).astype(jnp.float32)

    out = pl.pallas_call(
        _fused_kernel,
        out_shape=jax.ShapeDtypeStruct((Nb, NC, L), jnp.float32),
        grid_spec=pltpu.PrefetchScalarGridSpec(
            num_scalar_prefetch=0,
            grid=(Nb,),
            in_specs=[
                pl.BlockSpec((1, K, 4 * L), lambda i: (i, 0, 0)),
                # weights/biases: constant index maps -> fetched once, VMEM-resident
                pl.BlockSpec((C1, K), lambda i: (0, 0)),
                pl.BlockSpec((C1, 1), lambda i: (0, 0)),
                pl.BlockSpec((NC, C1), lambda i: (0, 0)),
                pl.BlockSpec((NC, 1), lambda i: (0, 0)),
            ],
            out_specs=pl.BlockSpec((1, NC, L), lambda i: (i, 0, 0)),
        ),
        compiler_params=pltpu.CompilerParams(dimension_semantics=("parallel",)),
    )(PT, w1m, b1m, w2m, b2m)

    # --- glue: (Nb, NC, BN*Hh*Wh) -> NCHW (tiny reshuffle on the small output)
    out = (out.reshape(Nb, NC, BN, Hh, Wh)
              .transpose(0, 2, 1, 3, 4)
              .reshape(Np, NC, Hh, Wh))
    return out[:N]


def _reference(x, w1, b1, w2, b2):
    """Pure-JAX reference of the PyTorch forward (NCHW)."""
    y = lax.conv_general_dilated(x, w1, window_strides=(1, 1),
                                 padding=((1, 1), (1, 1)),
                                 dimension_numbers=("NCHW", "OIHW", "NCHW"))
    y = jnp.maximum(y + b1.reshape(1, -1, 1, 1), 0.0)
    y = lax.reduce_window(y, -jnp.inf, lax.max,
                          window_dimensions=(1, 1, 2, 2),
                          window_strides=(1, 1, 2, 2), padding="VALID")
    y = lax.conv_general_dilated(y, w2, window_strides=(1, 1), padding="VALID",
                                 dimension_numbers=("NCHW", "OIHW", "NCHW"))
    return y + b2.reshape(1, -1, 1, 1)


if __name__ == "__main__":
    # Small, MNIST-consistent shapes: batch=8, in_channels=1, 16x16 spatial.
    N, Cin, H, W = 8, 1, 16, 16
    base_channels, n_classes = 16, 10

    key = jax.random.PRNGKey(0)
    kx, kw1, kb1, kw2, kb2 = jax.random.split(key, 5)

    x = jax.random.normal(kx, (N, Cin, H, W), dtype=jnp.float32)
    # Deterministic synthetic parameters (shapes follow nn.Conv2d in __init__).
    w1 = 0.1 * jax.random.normal(kw1, (base_channels, Cin, 3, 3), dtype=jnp.float32)
    b1 = 0.1 * jax.random.normal(kb1, (base_channels,), dtype=jnp.float32)
    w2 = 0.1 * jax.random.normal(kw2, (n_classes, base_channels, 1, 1), dtype=jnp.float32)
    b2 = 0.1 * jax.random.normal(kb2, (n_classes,), dtype=jnp.float32)

    # block_n=4 -> grid=(2,), an even number of parallel blocks (keeps both v7x TCs busy).
    out = simple_conv_linear_net_mnist(x, w1, b1, w2, b2, block_n=4)
    out = jax.block_until_ready(out)

    ref = _reference(x, w1, b1, w2, b2)
    assert out.shape == (N, n_classes, H // 2, W // 2), out.shape
    # Slightly relaxed vs pure-f32 because patches are shipped as bf16 (weights & math stay f32).
    assert jnp.allclose(out, ref, rtol=2e-3, atol=2e-3), float(jnp.max(jnp.abs(out - ref)))

    print("KERNEL_OK")
</pallas_src>

<mosaic_0001>
module attributes {stable_mosaic.version = 11 : i64} {
  func.func @_fused_kernel(%arg0: i32, %arg1: memref<1x9x1024xbf16, #tpu.memory_space<vmem>>, %arg2: memref<16x9xf32, #tpu.memory_space<vmem>>, %arg3: memref<16x1xf32, #tpu.memory_space<vmem>>, %arg4: memref<10x16xf32, #tpu.memory_space<vmem>>, %arg5: memref<10x1xf32, #tpu.memory_space<vmem>>, %arg6: memref<1x10x256xf32, #tpu.memory_space<vmem>>) attributes {dimension_semantics = [#tpu.dimension_semantics<parallel>], iteration_bounds = array<i64: 2>, scalar_prefetch = 0 : i64, scratch_operands = 0 : i64, tpu.core_type = #tpu.core_type<tc>, window_params = [{transform_indices = @transform_0, window_bounds = array<i64: 1, 9, 1024>}, {pipeline_mode = #tpu.pipeline_mode<synchronous>, transform_indices = @transform_1, window_bounds = array<i64: 16, 9>}, {pipeline_mode = #tpu.pipeline_mode<synchronous>, transform_indices = @transform_2, window_bounds = array<i64: 16, 1>}, {pipeline_mode = #tpu.pipeline_mode<synchronous>, transform_indices = @transform_3, window_bounds = array<i64: 10, 16>}, {pipeline_mode = #tpu.pipeline_mode<synchronous>, transform_indices = @transform_4, window_bounds = array<i64: 10, 1>}, {transform_indices = @transform_5, window_bounds = array<i64: 1, 10, 256>}]} {
    %c0 = arith.constant 0 : index
    %c0_0 = arith.constant 0 : index
    %c0_1 = arith.constant 0 : index
    %0 = vector.load %arg1[%c0, %c0_0, %c0_1] : memref<1x9x1024xbf16, #tpu.memory_space<vmem>>, vector<1x9x1024xbf16>
    %1 = vector.shape_cast %0 : vector<1x9x1024xbf16> to vector<9x1024xbf16>
    %2 = arith.extf %1 : vector<9x1024xbf16> to vector<9x1024xf32>
    %c0_2 = arith.constant 0 : index
    %c0_3 = arith.constant 0 : index
    %3 = vector.load %arg2[%c0_2, %c0_3] : memref<16x9xf32, #tpu.memory_space<vmem>>, vector<16x9xf32>
    %cst = arith.constant dense<0.000000e+00> : vector<16x1024xf32>
    %4 = tpu.matmul %3, %2, %cst {dimension_numbers = #tpu.dot_dimension_numbers<[1], [0], [0], [1], [0, 0, 1, 1], [], []>} : vector<16x9xf32>, vector<9x1024xf32>, vector<16x1024xf32> -> vector<16x1024xf32>
    %5 = vector.extract_strided_slice %4 {offsets = [0, 0], sizes = [16, 256], strides = [1, 1]} : vector<16x1024xf32> to vector<16x256xf32>
    %6 = vector.extract_strided_slice %4 {offsets = [0, 256], sizes = [16, 256], strides = [1, 1]} : vector<16x1024xf32> to vector<16x256xf32>
    %7 = arith.maximumf %5, %6 : vector<16x256xf32>
    %8 = vector.extract_strided_slice %4 {offsets = [0, 512], sizes = [16, 256], strides = [1, 1]} : vector<16x1024xf32> to vector<16x256xf32>
    %9 = vector.extract_strided_slice %4 {offsets = [0, 768], sizes = [16, 256], strides = [1, 1]} : vector<16x1024xf32> to vector<16x256xf32>
    %10 = arith.maximumf %8, %9 : vector<16x256xf32>
    %11 = arith.maximumf %7, %10 : vector<16x256xf32>
    %c0_4 = arith.constant 0 : index
    %c0_5 = arith.constant 0 : index
    %12 = vector.load %arg3[%c0_4, %c0_5] : memref<16x1xf32, #tpu.memory_space<vmem>>, vector<16x1xf32>
    %13 = vector.broadcast %12 : vector<16x1xf32> to vector<16x256xf32>
    %14 = arith.addf %11, %13 : vector<16x256xf32>
    %cst_6 = arith.constant 0.000000e+00 : f32
    %15 = vector.broadcast %cst_6 : f32 to vector<16x256xf32>
    %16 = arith.maximumf %14, %15 : vector<16x256xf32>
    %c0_7 = arith.constant 0 : index
    %c0_8 = arith.constant 0 : index
    %17 = vector.load %arg4[%c0_7, %c0_8] : memref<10x16xf32, #tpu.memory_space<vmem>>, vector<10x16xf32>
    %cst_9 = arith.constant dense<0.000000e+00> : vector<10x256xf32>
    %18 = tpu.matmul %17, %16, %cst_9 {dimension_numbers = #tpu.dot_dimension_numbers<[1], [0], [0], [1], [0, 0, 1, 1], [], []>} : vector<10x16xf32>, vector<16x256xf32>, vector<10x256xf32> -> vector<10x256xf32>
    %c0_10 = arith.constant 0 : index
    %c0_11 = arith.constant 0 : index
    %19 = vector.load %arg5[%c0_10, %c0_11] : memref<10x1xf32, #tpu.memory_space<vmem>>, vector<10x1xf32>
    %20 = vector.broadcast %19 : vector<10x1xf32> to vector<10x256xf32>
    %21 = arith.addf %18, %20 : vector<10x256xf32>
    %c0_12 = arith.constant 0 : index
    %c0_13 = arith.constant 0 : index
    %c0_14 = arith.constant 0 : index
    %22 = vector.load %arg6[%c0_12, %c0_13, %c0_14] : memref<1x10x256xf32, #tpu.memory_space<vmem>>, vector<1x10x256xf32>
    %23 = vector.shape_cast %22 : vector<1x10x256xf32> to vector<10x256xf32>
    %24 = vector.shape_cast %21 : vector<10x256xf32> to vector<1x10x256xf32>
    tpu.vector_store %arg6[%c0_12, %c0_13, %c0_14], %24 {strides = array<i32>} : memref<1x10x256xf32, #tpu.memory_space<vmem>>, vector<1x10x256xf32>,
    return
  }
  func.func @transform_0(%arg0: i32) -> (i32, i32, i32) {
    %c0_i32 = arith.constant 0 : i32
    %c0_i32_0 = arith.constant 0 : i32
    %c0_i32_1 = arith.constant 0 : i32
    return %arg0, %c0_i32, %c0_i32_0 : i32, i32, i32
  }
  func.func @transform_1(%arg0: i32) -> (i32, i32) {
    %c0_i32 = arith.constant 0 : i32
    %c0_i32_0 = arith.constant 0 : i32
    %c0_i32_1 = arith.constant 0 : i32
    return %c0_i32, %c0_i32_0 : i32, i32
  }
  func.func @transform_2(%arg0: i32) -> (i32, i32) {
    %c0_i32 = arith.constant 0 : i32
    %c0_i32_0 = arith.constant 0 : i32
    %c0_i32_1 = arith.constant 0 : i32
    return %c0_i32, %c0_i32_0 : i32, i32
  }
  func.func @transform_3(%arg0: i32) -> (i32, i32) {
    %c0_i32 = arith.constant 0 : i32
    %c0_i32_0 = arith.constant 0 : i32
    %c0_i32_1 = arith.constant 0 : i32
    return %c0_i32, %c0_i32_0 : i32, i32
  }
  func.func @transform_4(%arg0: i32) -> (i32, i32) {
    %c0_i32 = arith.constant 0 : i32
    %c0_i32_0 = arith.constant 0 : i32
    %c0_i32_1 = arith.constant 0 : i32
    return %c0_i32, %c0_i32_0 : i32, i32
  }
  func.func @transform_5(%arg0: i32) -> (i32, i32, i32) {
    %c0_i32 = arith.constant 0 : i32
    %c0_i32_0 = arith.constant 0 : i32
    %c0_i32_1 = arith.constant 0 : i32
    return %arg0, %c0_i32, %c0_i32_0 : i32, i32, i32
  }
}

</mosaic_0001>

<llo_original>
// kernel: tpu_custom_call.1
$region0: #{tpu_custom_call.1}
  #allocation0 [shape = 'u32[]', space=smem, size = 0x4, offset = 0x4, fixed_abs, tag = 'smem constant byte address 0x4 - core index']
  #allocation1 [shape = 'u32[144,128]{1,0:T(1,128)}', space=vmem, size = 0x12000, scoped, tag = 'internal scratch']
  %s0 = inlined_call_operand.vmem [shape: bf16[2,9,1024], index: 0, kind: input, shape index: {}]
  %s1 = inlined_call_operand.vmem [shape: f32[16,9], index: 1, kind: input, shape index: {}]
  %s2 = inlined_call_operand.vmem [shape: f32[16,1], index: 2, kind: input, shape index: {}]
  %s3 = inlined_call_operand.vmem [shape: f32[10,16], index: 3, kind: input, shape index: {}]
  %s4 = inlined_call_operand.vmem [shape: f32[10,1], index: 4, kind: input, shape index: {}]
  %s5 = inlined_call_operand.vmem [shape: f32[2,10,256], index: 5, kind: output, shape index: {}]
  %s6 = sld [smem:[#allocation0]]
  $region53: #{tpu_custom_call.1} parent=0
    _
  %s8 = ssub.s32 1, %s6
  %s9 = scalar_select 0, %s8, %s6
  loop: start=0, step=1, limit=4
  $region2: #{tpu_custom_call.1} parent=0 // loop_pre_header
    _
  $region3: #{tpu_custom_call.1} parent=0 // loop_header
    %s11 = sphi 0, %s15
    %p12 = scmp.ge.s32.totalorder %s11, 4
    %s21 = sphi 0, %s23
    %s24 = sphi 0, %s21
    %s25 = sphi 0, %s24
    %s41 = sphi 0, %s25
    %s45 = sphi 0, %s45
    %s47 = sphi 0, %s45
    %s48 = sphi 0, %s47
    %s62 = sphi 0, %s48
    %s66 = sphi 0, %s66
    %s68 = sphi 0, %s66
    %s69 = sphi 0, %s68
    %s83 = sphi 0, %s69
    %s87 = sphi 0, %s87
    %s89 = sphi 0, %s87
    %s90 = sphi 0, %s89
    %s104 = sphi 0, %s90
    %s108 = sphi 0, %s108
    %s110 = sphi 0, %s108
    %s111 = sphi 0, %s110
    %s125 = sphi 0, %s111
    %s131 = sphi 0, %s133
    %s134 = sphi 0, %s131
    %s135 = sphi 0, %s134
    %s151 = sphi 0, %s135
  $region4: #{tpu_custom_call.1} parent=0 // loop_header_branch
    %14 = sbr.rel (%p12) target = $region8
  $region5: #{tpu_custom_call.1} parent=0 // loop_body
    %s16 = ssub.s32 %s11, 1
    %s17 = ssub.s32 %s11, 2
    %s18 = sadd.s32 %s11, 1
    %s19 = ssub.s32 %s11, %s18
    %p20 = scmp.eq.s32.totalorder %s19, 0
    %s22 = sadd.s32 %s21, 1
    %s23 = scalar_select %p20, %s21, %s22
    %p26 = pneg %p20
    %p27 = scmp.eq.s32.totalorder %s11, 1
    %p28 = por %p26, %p27
    %p29 = scmp.ne.s32.totalorder %s21, %s24
    %p30 = scmp.eq.s32.totalorder %s11, 0
    %p31 = por %p29, %p30
    %p32 = scmp.ne.s32.totalorder %s21, %s24
    %p33 = scmp.eq.s32.totalorder %s16, 1
    %p34 = por %p32, %p33
    %p35 = scmp.ne.s32.totalorder %s24, %s25
    %p36 = scmp.eq.s32.totalorder %s16, 0
    %p37 = por %p35, %p36
    %p38 = scmp.ne.s32.totalorder %s24, %s25
    %p39 = scmp.eq.s32.totalorder %s17, 1
    %p40 = por %p38, %p39
    %p42 = scmp.ne.s32.totalorder %s25, %s41
    %p43 = scmp.eq.s32.totalorder %s17, 0
    %p44 = por %p42, %p43
    %s46 = sadd.s32 %s45, 1
    %p49 = scmp.eq.s32.totalorder %s11, 1
    %p50 = scmp.ne.s32.totalorder %s45, %s47
    %p51 = scmp.eq.s32.totalorder %s11, 0
    %p52 = por %p50, %p51
    %p53 = scmp.ne.s32.totalorder %s45, %s47
    %p54 = scmp.eq.s32.totalorder %s16, 1
    %p55 = por %p53, %p54
    %p56 = scmp.ne.s32.totalorder %s47, %s48
    %p57 = scmp.eq.s32.totalorder %s16, 0
    %p58 = por %p56, %p57
    %p59 = scmp.ne.s32.totalorder %s47, %s48
    %p60 = scmp.eq.s32.totalorder %s17, 1
    %p61 = por %p59, %p60
    %p63 = scmp.ne.s32.totalorder %s48, %s62
    %p64 = scmp.eq.s32.totalorder %s17, 0
    %p65 = por %p63, %p64
    %s67 = sadd.s32 %s66, 1
    %p70 = scmp.eq.s32.totalorder %s11, 1
    %p71 = scmp.ne.s32.totalorder %s66, %s68
    %p72 = scmp.eq.s32.totalorder %s11, 0
    %p73 = por %p71, %p72
    %p74 = scmp.ne.s32.totalorder %s66, %s68
    %p75 = scmp.eq.s32.totalorder %s16, 1
    %p76 = por %p74, %p75
    %p77 = scmp.ne.s32.totalorder %s68, %s69
    %p78 = scmp.eq.s32.totalorder %s16, 0
    %p79 = por %p77, %p78
    %p80 = scmp.ne.s32.totalorder %s68, %s69
    %p81 = scmp.eq.s32.totalorder %s17, 1
    %p82 = por %p80, %p81
    %p84 = scmp.ne.s32.totalorder %s69, %s83
    %p85 = scmp.eq.s32.totalorder %s17, 0
    %p86 = por %p84, %p85
    %s88 = sadd.s32 %s87, 1
    %p91 = scmp.eq.s32.totalorder %s11, 1
    %p92 = scmp.ne.s32.totalorder %s87, %s89
    %p93 = scmp.eq.s32.totalorder %s11, 0
    %p94 = por %p92, %p93
    %p95 = scmp.ne.s32.totalorder %s87, %s89
    %p96 = scmp.eq.s32.totalorder %s16, 1
    %p97 = por %p95, %p96
    %p98 = scmp.ne.s32.totalorder %s89, %s90
    %p99 = scmp.eq.s32.totalorder %s16, 0
    %p100 = por %p98, %p99
    %p101 = scmp.ne.s32.totalorder %s89, %s90
    %p102 = scmp.eq.s32.totalorder %s17, 1
    %p103 = por %p101, %p102
    %p105 = scmp.ne.s32.totalorder %s90, %s104
    %p106 = scmp.eq.s32.totalorder %s17, 0
    %p107 = por %p105, %p106
    %s109 = sadd.s32 %s108, 1
    %p112 = scmp.eq.s32.totalorder %s11, 1
    %p113 = scmp.ne.s32.totalorder %s108, %s110
    %p114 = scmp.eq.s32.totalorder %s11, 0
    %p115 = por %p113, %p114
    %p116 = scmp.ne.s32.totalorder %s108, %s110
    %p117 = scmp.eq.s32.totalorder %s16, 1
    %p118 = por %p116, %p117
    %p119 = scmp.ne.s32.totalorder %s110, %s111
    %p120 = scmp.eq.s32.totalorder %s16, 0
    %p121 = por %p119, %p120
    %p122 = scmp.ne.s32.totalorder %s110, %s111
    %p123 = scmp.eq.s32.totalorder %s17, 1
    %p124 = por %p122, %p123
    %p126 = scmp.ne.s32.totalorder %s111, %s125
    %p127 = scmp.eq.s32.totalorder %s17, 0
    %p128 = por %p126, %p127
    %s129 = ssub.s32 %s11, %s18
    %p130 = scmp.eq.s32.totalorder %s129, 0
    %s132 = sadd.s32 %s131, 1
    %s133 = scalar_select %p130, %s131, %s132
    %p136 = pneg %p130
    %p137 = scmp.eq.s32.totalorder %s11, 1
    %p138 = por %p136, %p137
    %p139 = scmp.ne.s32.totalorder %s131, %s134
    %p140 = scmp.eq.s32.totalorder %s11, 0
    %p141 = por %p139, %p140
    %p142 = scmp.ne.s32.totalorder %s131, %s134
    %p143 = scmp.eq.s32.totalorder %s16, 1
    %p144 = por %p142, %p143
    %p145 = scmp.ne.s32.totalorder %s134, %s135
    %p146 = scmp.eq.s32.totalorder %s16, 0
    %p147 = por %p145, %p146
    %p148 = scmp.ne.s32.totalorder %s134, %s135
    %p149 = scmp.eq.s32.totalorder %s17, 1
    %p150 = por %p148, %p149
    %p152 = scmp.ne.s32.totalorder %s135, %s151
    %p153 = scmp.eq.s32.totalorder %s17, 0
    %p154 = por %p152, %p153
    %p155 = scmp.le.s32.totalorder 1, %s11
    %p156 = scmp.lt.s32.totalorder %s11, 3
    %p157 = pnand %p155, %p156
    %p158 = pneg %p157
    // Predicated region
    $region9: #{tpu_custom_call.1} parent=5 // pred_check
      _
    $region10: #{tpu_custom_call.1} parent=5 // pred_check_branch
      %160 = sbr.rel (%p157) target = $region12
    $region11: #{tpu_custom_call.1} parent=5 // pred_region
      %s161 = ssub.s32 %s11, 1
      // Predicated region
      $region13: #{tpu_custom_call.1} parent=11 // pred_check
        %p162 = pneg %p58
      $region14: #{tpu_custom_call.1} parent=11 // pred_check_branch
        %164 = sbr.rel (%p162) target = $region16
      $region15: #{tpu_custom_call.1} parent=11 // pred_region
        _
      $region16: #{tpu_custom_call.1} parent=11 // pred_fallthru
        _
      // Predicated region
      $region17: #{tpu_custom_call.1} parent=11 // pred_check
        %p165 = pneg %p79
      $region18: #{tpu_custom_call.1} parent=11 // pred_check_branch
        %167 = sbr.rel (%p165) target = $region20
      $region19: #{tpu_custom_call.1} parent=11 // pred_region
        _
      $region20: #{tpu_custom_call.1} parent=11 // pred_fallthru
        _
      // Predicated region
      $region21: #{tpu_custom_call.1} parent=11 // pred_check
        %p168 = pneg %p100
      $region22: #{tpu_custom_call.1} parent=11 // pred_check_branch
        %170 = sbr.rel (%p168) target = $region24
      $region23: #{tpu_custom_call.1} parent=11 // pred_region
        _
      $region24: #{tpu_custom_call.1} parent=11 // pred_fallthru
        _
      // Predicated region
      $region25: #{tpu_custom_call.1} parent=11 // pred_check
        %p171 = pneg %p121
      $region26: #{tpu_custom_call.1} parent=11 // pred_check_branch
        %173 = sbr.rel (%p171) target = $region28
      $region27: #{tpu_custom_call.1} parent=11 // pred_region
        _
      $region28: #{tpu_custom_call.1} parent=11 // pred_fallthru
        _
    $region12: #{tpu_custom_call.1} parent=5 // pred_fallthru
      _
    %p174 = scmp.lt.s32.totalorder %s11, 2
    // Predicated region
    $region29: #{tpu_custom_call.1} parent=5 // pred_check
      %p175 = pneg %p174
    $region30: #{tpu_custom_call.1} parent=5 // pred_check_branch
      %177 = sbr.rel (%p175) target = $region32
    $region31: #{tpu_custom_call.1} parent=5 // pred_region
      // Predicated region
      $region33: #{tpu_custom_call.1} parent=31 // pred_check
        %p178 = pneg %p31
      $region34: #{tpu_custom_call.1} parent=31 // pred_check_branch
        %180 = sbr.rel (%p178) target = $region36
      $region35: #{tpu_custom_call.1} parent=31 // pred_region
        %p181 = scmp.lt.s32.totalorder %s11, 1
        %s182 = scalar_select %p181, %s11, 1
        %s183 = smul.addr %s182, 16
        %s184 = smul.addr %s183, 4
        %s185 = scalar_lea.vmem %s0, %s184
      $region36: #{tpu_custom_call.1} parent=31 // pred_fallthru
        _
    $region32: #{tpu_custom_call.1} parent=5 // pred_fallthru
      _
    %p186 = scmp.le.s32.totalorder 1, %s11
    %p187 = scmp.lt.s32.totalorder %s11, 3
    %p188 = pnand %p186, %p187
    %p189 = pneg %p188
    // Predicated region
    $region37: #{tpu_custom_call.1} parent=5 // pred_check
      _
    $region38: #{tpu_custom_call.1} parent=5 // pred_check_branch
      %191 = sbr.rel (%p188) target = $region40
    $region39: #{tpu_custom_call.1} parent=5 // pred_region
      %s192 = ssub.s32 %s11, 1
      %p193 = scmp.lt.s32.totalorder %s16, 1
      %s194 = scalar_select %p193, %s16, 1
      %s195 = smul.addr %s194, 16
      %s196 = smul.addr %s195, 4
      %s197 = scalar_lea.vmem %s0, %s196
      %p198 = pneg %p37
      %p199 = pneg %p34
      %p200 = pneg %p58
      %p201 = pneg %p55
      %p202 = pneg %p79
      %p203 = pneg %p76
      %p204 = pneg %p100
      %p205 = pneg %p97
      %p206 = pneg %p121
      %p207 = pneg %p118
      %p208 = pneg %p147
      %p209 = pneg %p144
      %p210 = scmp.lt.s32.totalorder %s16, 1
      %s211 = scalar_select %p210, %s16, 1
      %s212 = smul.addr %s211, 4
      %s213 = smul.addr %s212, 8
      %s214 = scalar_lea.vmem %s5, %s213
      %p215 = scmp.lt.s32.totalorder %s16, 1
      %s216 = scalar_select %p215, %s16, 1
      %s217 = smul.addr %s216, 16
      %s218 = smul.addr %s217, 4
      %s219 = scalar_lea.vmem %s0, %s218
      %p220 = scmp.lt.s32.totalorder %s16, 1
      %s221 = scalar_select %p220, %s16, 1
      %s222 = smul.addr %s221, 4
      %s223 = smul.addr %s222, 8
      %s224 = scalar_lea.vmem %s5, %s223
      %v225 = vld [vmem:[%s219] sm:$0xff]
      %v226 = vld [vmem:[%s219 + $0x8] sm:$0xff]
      %v227 = vld [vmem:[%s219 + $0x10] sm:$0xff]
      %v228 = vld [vmem:[%s219 + $0x18] sm:$0xff]
      %v229 = vld [vmem:[%s219 + $0x20] sm:$0x11]
      %v230 = vld [vmem:[%s219 + $0x28] sm:$0x11]
      %v231 = vld [vmem:[%s219 + $0x30] sm:$0x11]
      %v232 = vld [vmem:[%s219 + $0x38] sm:$0x11]
      %v233 = vunpack.c.l.bf16 %v225
      %v234 = vunpack.c.h.bf16 %v225
      %v235 = vunpack.c.l.bf16 %v226
      %v236 = vunpack.c.h.bf16 %v226
      %v237 = vunpack.c.l.bf16 %v227
      %v238 = vunpack.c.h.bf16 %v227
      %v239 = vunpack.c.l.bf16 %v228
      %v240 = vunpack.c.h.bf16 %v228
      %v241 = vunpack.c.l.bf16 %v229
      %v242 = vunpack.c.h.bf16 %v229
      %v243 = vunpack.c.l.bf16 %v230
      %v244 = vunpack.c.h.bf16 %v230
      %v245 = vunpack.c.l.bf16 %v231
      %v246 = vunpack.c.h.bf16 %v231
      %v247 = vunpack.c.l.bf16 %v232
      %v248 = vunpack.c.h.bf16 %v232
      %v249 = vld [vmem:[%s1] sm:$0xff]
      %v250 = vld [vmem:[%s1 + $0x8] sm:$0xff]
      %vm251 = vcmask 72704
      %v253 = vsel %vm251, %v249, 0
      %v256 = vsel %vm251, %v250, 0
      %vm258 = vcmask 1040384
      %v260 = vsel %vm258, %v241, 0
      %v263 = vsel %vm258, %v242, 0
      %v266 = vsel %vm258, %v243, 0
      %v269 = vsel %vm258, %v244, 0
      %v272 = vsel %vm258, %v245, 0
      %v275 = vsel %vm258, %v246, 0
      %v278 = vsel %vm258, %v247, 0
      %v281 = vsel %vm258, %v248, 0
      %283 = vmatprep.subr.mxu0 %v234
      %284 = vmatpush1.msra.mxu0 %v233
      %285 = vmatprep.subr.mxu0 %v263
      %286 = vmatpush1.msra.mxu0 %v260
      %287 = vmatprep.subr.mxu0 0.0
      %288 = vmatpush1.msra.mxu0 0.0
      %289 = vmatprep.subr.mxu0 0.0
      %290 = vmatpush1.msra.mxu0 0.0
      %291 = vmatprep.subr.mxu0 0.0
      %292 = vmatpush1.msra.mxu0 0.0
      %293 = vmatprep.subr.mxu0 0.0
      %294 = vmatpush1.msra.mxu0 0.0
      %295 = vmatprep.subr.mxu0 0.0
      %296 = vmatpush1.msra.mxu0 0.0
      %297 = vmatprep.subr.mxu0 0.0
      %298 = vmatpush1.msra.mxu0 0.0
      %299 = vmatprep.subr.mxu0 0.0
      %300 = vmatpush1.msra.mxu0 0.0
      %301 = vmatprep.subr.mxu0 0.0
      %302 = vmatpush1.msra.mxu0 0.0
      %303 = vmatprep.subr.mxu0 0.0
      %304 = vmatpush1.msra.mxu0 0.0
      %305 = vmatprep.subr.mxu0 0.0
      %306 = vmatpush1.msra.mxu0 0.0
      %307 = vmatprep.subr.mxu0 0.0
      %308 = vmatpush1.msra.mxu0 0.0
      %309 = vmatprep.subr.mxu0 0.0
      %310 = vmatpush1.msra.mxu0 0.0
      %311 = vmatprep.subr.mxu0 0.0
      %312 = vmatpush1.msra.mxu0 0.0
      %313 = vmatprep.subr.mxu0 0.0
      %314 = vmatpush1.msra.mxu0 0.0
      %315 = vmatprep.subr.mxu0 0.0
      %316 = vmatpush1.msra.mxu0 0.0
      %317 = vmatprep.subr.mxu0 0.0
      %318 = vmatpush1.msra.mxu0 0.0
      %319 = vmatprep.subr.mxu0 0.0
      %320 = vmatpush1.msra.mxu0 0.0
      %321 = vmatprep.subr.mxu0 0.0
      %322 = vmatpush1.msra.mxu0 0.0
      %323 = vmatprep.subr.mxu0 0.0
      %324 = vmatpush1.msra.mxu0 0.0
      %325 = vmatprep.subr.mxu0 0.0
      %326 = vmatpush1.msra.mxu0 0.0
      %327 = vmatprep.subr.mxu0 0.0
      %328 = vmatpush1.msra.mxu0 0.0
      %329 = vmatprep.subr.mxu0 0.0
      %330 = vmatpush1.msra.mxu0 0.0
      %331 = vmatprep.subr.mxu0 0.0
      %332 = vmatpush1.msra.mxu0 0.0
      %333 = vmatprep.subr.mxu0 0.0
      %334 = vmatpush1.msra.mxu0 0.0
      %335 = vmatprep.subr.mxu0 0.0
      %336 = vmatpush1.msra.mxu0 0.0
      %337 = vmatprep.subr.mxu0 0.0
      %338 = vmatpush1.msra.mxu0 0.0
      %339 = vmatprep.subr.mxu0 0.0
      %340 = vmatpush1.msra.mxu0 0.0
      %341 = vmatprep.subr.mxu0 0.0
      %342 = vmatpush1.msra.mxu0 0.0
      %343 = vmatprep.subr.mxu0 0.0
      %344 = vmatpush1.msra.mxu0 0.0
      %345 = vmatprep.subr.mxu0 0.0
      %346 = vmatpush1.msra.mxu0 0.0
      %347 = vmatprep.mubr.f32.mxu0 0.0
      %348 = vmatmul.mubr.f32.gmra.mrb[0].mxu0 %v253
      %v349 = vpop.f32.mrb[0].mxu0
      %v350 = vadd.f32 0.0, %v349
      %v351 = vpop.f32.mrb[0].mxu0
      %v352 = vadd.f32 0.0, %v351
      %353 = vmatprep.mubr.f32.mxu0 0.0
      %354 = vmatmul.mubr.f32.gmra.mrb[0].mxu0 %v256
      %v355 = vpop.f32.mrb[0].mxu0
      %v356 = vadd.f32 0.0, %v355
      %v357 = vpop.f32.mrb[0].mxu0
      %v358 = vadd.f32 0.0, %v357
      %359 = vdwg.mxu0
      %360 = vmatprep.subr.mxu0 %v236
      %361 = vmatpush1.msra.mxu0 %v235
      %362 = vmatprep.subr.mxu0 %v269
      %363 = vmatpush1.msra.mxu0 %v266
      %364 = vmatprep.subr.mxu0 0.0
      %365 = vmatpush1.msra.mxu0 0.0
      %366 = vmatprep.subr.mxu0 0.0
      %367 = vmatpush1.msra.mxu0 0.0
      %368 = vmatprep.subr.mxu0 0.0
      %369 = vmatpush1.msra.mxu0 0.0
      %370 = vmatprep.subr.mxu0 0.0
      %371 = vmatpush1.msra.mxu0 0.0
      %372 = vmatprep.subr.mxu0 0.0
      %373 = vmatpush1.msra.mxu0 0.0
      %374 = vmatprep.subr.mxu0 0.0
      %375 = vmatpush1.msra.mxu0 0.0
      %376 = vmatprep.subr.mxu0 0.0
      %377 = vmatpush1.msra.mxu0 0.0
      %378 = vmatprep.subr.mxu0 0.0
      %379 = vmatpush1.msra.mxu0 0.0
      %380 = vmatprep.subr.mxu0 0.0
      %381 = vmatpush1.msra.mxu0 0.0
      %382 = vmatprep.subr.mxu0 0.0
      %383 = vmatpush1.msra.mxu0 0.0
      %384 = vmatprep.subr.mxu0 0.0
      %385 = vmatpush1.msra.mxu0 0.0
      %386 = vmatprep.subr.mxu0 0.0
      %387 = vmatpush1.msra.mxu0 0.0
      %388 = vmatprep.subr.mxu0 0.0
      %389 = vmatpush1.msra.mxu0 0.0
      %390 = vmatprep.subr.mxu0 0.0
      %391 = vmatpush1.msra.mxu0 0.0
      %392 = vmatprep.subr.mxu0 0.0
      %393 = vmatpush1.msra.mxu0 0.0
      %394 = vmatprep.subr.mxu0 0.0
      %395 = vmatpush1.msra.mxu0 0.0
      %396 = vmatprep.subr.mxu0 0.0
      %397 = vmatpush1.msra.mxu0 0.0
      %398 = vmatprep.subr.mxu0 0.0
      %399 = vmatpush1.msra.mxu0 0.0
      %400 = vmatprep.subr.mxu0 0.0
      %401 = vmatpush1.msra.mxu0 0.0
      %402 = vmatprep.subr.mxu0 0.0
      %403 = vmatpush1.msra.mxu0 0.0
      %404 = vmatprep.subr.mxu0 0.0
      %405 = vmatpush1.msra.mxu0 0.0
      %406 = vmatprep.subr.mxu0 0.0
      %407 = vmatpush1.msra.mxu0 0.0
      %408 = vmatprep.subr.mxu0 0.0
      %409 = vmatpush1.msra.mxu0 0.0
      %410 = vmatprep.subr.mxu0 0.0
      %411 = vmatpush1.msra.mxu0 0.0
      %412 = vmatprep.subr.mxu0 0.0
      %413 = vmatpush1.msra.mxu0 0.0
      %414 = vmatprep.subr.mxu0 0.0
      %415 = vmatpush1.msra.mxu0 0.0
      %416 = vmatprep.subr.mxu0 0.0
      %417 = vmatpush1.msra.mxu0 0.0
      %418 = vmatprep.subr.mxu0 0.0
      %419 = vmatpush1.msra.mxu0 0.0
      %420 = vmatprep.subr.mxu0 0.0
      %421 = vmatpush1.msra.mxu0 0.0
      %422 = vmatprep.subr.mxu0 0.0
      %423 = vmatpush1.msra.mxu0 0.0
      %424 = vmatprep.mubr.f32.mxu0 0.0
      %425 = vmatmul.mubr.f32.gmra.mrb[0].mxu0 %v253
      %v426 = vpop.f32.mrb[0].mxu0
      %v427 = vadd.f32 0.0, %v426
      %v428 = vpop.f32.mrb[0].mxu0
      %v429 = vadd.f32 0.0, %v428
      %430 = vmatprep.mubr.f32.mxu0 0.0
      %431 = vmatmul.mubr.f32.gmra.mrb[0].mxu0 %v256
      %v432 = vpop.f32.mrb[0].mxu0
      %v433 = vadd.f32 0.0, %v432
      %v434 = vpop.f32.mrb[0].mxu0
      %v435 = vadd.f32 0.0, %v434
      %436 = vdwg.mxu0
      %437 = vmatprep.subr.mxu0 %v238
      %438 = vmatpush1.msra.mxu0 %v237
      %439 = vmatprep.subr.mxu0 %v275
      %440 = vmatpush1.msra.mxu0 %v272
      %441 = vmatprep.subr.mxu0 0.0
      %442 = vmatpush1.msra.mxu0 0.0
      %443 = vmatprep.subr.mxu0 0.0
      %444 = vmatpush1.msra.mxu0 0.0
      %445 = vmatprep.subr.mxu0 0.0
      %446 = vmatpush1.msra.mxu0 0.0
      %447 = vmatprep.subr.mxu0 0.0
      %448 = vmatpush1.msra.mxu0 0.0
      %449 = vmatprep.subr.mxu0 0.0
      %450 = vmatpush1.msra.mxu0 0.0
      %451 = vmatprep.subr.mxu0 0.0
      %452 = vmatpush1.msra.mxu0 0.0
      %453 = vmatprep.subr.mxu0 0.0
      %454 = vmatpush1.msra.mxu0 0.0
      %455 = vmatprep.subr.mxu0 0.0
      %456 = vmatpush1.msra.mxu0 0.0
      %457 = vmatprep.subr.mxu0 0.0
      %458 = vmatpush1.msra.mxu0 0.0
      %459 = vmatprep.subr.mxu0 0.0
      %460 = vmatpush1.msra.mxu0 0.0
      %461 = vmatprep.subr.mxu0 0.0
      %462 = vmatpush1.msra.mxu0 0.0
      %463 = vmatprep.subr.mxu0 0.0
      %464 = vmatpush1.msra.mxu0 0.0
      %465 = vmatprep.subr.mxu0 0.0
      %466 = vmatpush1.msra.mxu0 0.0
      %467 = vmatprep.subr.mxu0 0.0
      %468 = vmatpush1.msra.mxu0 0.0
      %469 = vmatprep.subr.mxu0 0.0
      %470 = vmatpush1.msra.mxu0 0.0
      %471 = vmatprep.subr.mxu0 0.0
      %472 = vmatpush1.msra.mxu0 0.0
      %473 = vmatprep.subr.mxu0 0.0
      %474 = vmatpush1.msra.mxu0 0.0
      %475 = vmatprep.subr.mxu0 0.0
      %476 = vmatpush1.msra.mxu0 0.0
      %477 = vmatprep.subr.mxu0 0.0
      %478 = vmatpush1.msra.mxu0 0.0
      %479 = vmatprep.subr.mxu0 0.0
      %480 = vmatpush1.msra.mxu0 0.0
      %481 = vmatprep.subr.mxu0 0.0
      %482 = vmatpush1.msra.mxu0 0.0
      %483 = vmatprep.subr.mxu0 0.0
      %484 = vmatpush1.msra.mxu0 0.0
      %485 = vmatprep.subr.mxu0 0.0
      %486 = vmatpush1.msra.mxu0 0.0
      %487 = vmatprep.subr.mxu0 0.0
      %488 = vmatpush1.msra.mxu0 0.0
      %489 = vmatprep.subr.mxu0 0.0
      %490 = vmatpush1.msra.mxu0 0.0
      %491 = vmatprep.subr.mxu0 0.0
      %492 = vmatpush1.msra.mxu0 0.0
      %493 = vmatprep.subr.mxu0 0.0
      %494 = vmatpush1.msra.mxu0 0.0
      %495 = vmatprep.subr.mxu0 0.0
      %496 = vmatpush1.msra.mxu0 0.0
      %497 = vmatprep.subr.mxu0 0.0
      %498 = vmatpush1.msra.mxu0 0.0
      %499 = vmatprep.subr.mxu0 0.0
      %500 = vmatpush1.msra.mxu0 0.0
      %501 = vmatprep.mubr.f32.mxu0 0.0
      %502 = vmatmul.mubr.f32.gmra.mrb[0].mxu0 %v253
      %v503 = vpop.f32.mrb[0].mxu0
      %v504 = vadd.f32 0.0, %v503
      %v505 = vpop.f32.mrb[0].mxu0
      %v506 = vadd.f32 0.0, %v505
      %507 = vmatprep.mubr.f32.mxu0 0.0
      %508 = vmatmul.mubr.f32.gmra.mrb[0].mxu0 %v256
      %v509 = vpop.f32.mrb[0].mxu0
      %v510 = vadd.f32 0.0, %v509
      %v511 = vpop.f32.mrb[0].mxu0
      %v512 = vadd.f32 0.0, %v511
      %513 = vdwg.mxu0
      %514 = vmatprep.subr.mxu0 %v240
      %515 = vmatpush1.msra.mxu0 %v239
      %516 = vmatprep.subr.mxu0 %v281
      %517 = vmatpush1.msra.mxu0 %v278
      %518 = vmatprep.subr.mxu0 0.0
      %519 = vmatpush1.msra.mxu0 0.0
      %520 = vmatprep.subr.mxu0 0.0
      %521 = vmatpush1.msra.mxu0 0.0
      %522 = vmatprep.subr.mxu0 0.0
      %523 = vmatpush1.msra.mxu0 0.0
      %524 = vmatprep.subr.mxu0 0.0
      %525 = vmatpush1.msra.mxu0 0.0
      %526 = vmatprep.subr.mxu0 0.0
      %527 = vmatpush1.msra.mxu0 0.0
      %528 = vmatprep.subr.mxu0 0.0
      %529 = vmatpush1.msra.mxu0 0.0
      %530 = vmatprep.subr.mxu0 0.0
      %531 = vmatpush1.msra.mxu0 0.0
      %532 = vmatprep.subr.mxu0 0.0
      %533 = vmatpush1.msra.mxu0 0.0
      %534 = vmatprep.subr.mxu0 0.0
      %535 = vmatpush1.msra.mxu0 0.0
      %536 = vmatprep.subr.mxu0 0.0
      %537 = vmatpush1.msra.mxu0 0.0
      %538 = vmatprep.subr.mxu0 0.0
      %539 = vmatpush1.msra.mxu0 0.0
      %540 = vmatprep.subr.mxu0 0.0
      %541 = vmatpush1.msra.mxu0 0.0
      %542 = vmatprep.subr.mxu0 0.0
      %543 = vmatpush1.msra.mxu0 0.0
      %544 = vmatprep.subr.mxu0 0.0
      %545 = vmatpush1.msra.mxu0 0.0
      %546 = vmatprep.subr.mxu0 0.0
      %547 = vmatpush1.msra.mxu0 0.0
      %548 = vmatprep.subr.mxu0 0.0
      %549 = vmatpush1.msra.mxu0 0.0
      %550 = vmatprep.subr.mxu0 0.0
      %551 = vmatpush1.msra.mxu0 0.0
      %552 = vmatprep.subr.mxu0 0.0
      %553 = vmatpush1.msra.mxu0 0.0
      %554 = vmatprep.subr.mxu0 0.0
      %555 = vmatpush1.msra.mxu0 0.0
      %556 = vmatprep.subr.mxu0 0.0
      %557 = vmatpush1.msra.mxu0 0.0
      %558 = vmatprep.subr.mxu0 0.0
      %559 = vmatpush1.msra.mxu0 0.0
      %560 = vmatprep.subr.mxu0 0.0
      %561 = vmatpush1.msra.mxu0 0.0
      %562 = vmatprep.subr.mxu0 0.0
      %563 = vmatpush1.msra.mxu0 0.0
      %564 = vmatprep.subr.mxu0 0.0
      %565 = vmatpush1.msra.mxu0 0.0
      %566 = vmatprep.subr.mxu0 0.0
      %567 = vmatpush1.msra.mxu0 0.0
      %568 = vmatprep.subr.mxu0 0.0
      %569 = vmatpush1.msra.mxu0 0.0
      %570 = vmatprep.subr.mxu0 0.0
      %571 = vmatpush1.msra.mxu0 0.0
      %572 = vmatprep.subr.mxu0 0.0
      %573 = vmatpush1.msra.mxu0 0.0
      %574 = vmatprep.subr.mxu0 0.0
      %575 = vmatpush1.msra.mxu0 0.0
      %576 = vmatprep.subr.mxu0 0.0
      %577 = vmatpush1.msra.mxu0 0.0
      %578 = vmatprep.mubr.f32.mxu0 0.0
      %579 = vmatmul.mubr.f32.gmra.mrb[0].mxu0 %v253
      %v580 = vpop.f32.mrb[0].mxu0
      %v581 = vadd.f32 0.0, %v580
      %v582 = vpop.f32.mrb[0].mxu0
      %v583 = vadd.f32 0.0, %v582
      %584 = vmatprep.mubr.f32.mxu0 0.0
      %585 = vmatmul.mubr.f32.gmra.mrb[0].mxu0 %v256
      %v586 = vpop.f32.mrb[0].mxu0
      %v587 = vadd.f32 0.0, %v586
      %v588 = vpop.f32.mrb[0].mxu0
      %v589 = vadd.f32 0.0, %v588
      %590 = vdwg.mxu0
      %v591 = vmax.f32 %v350, %v427
      %v592 = vmax.f32 %v352, %v429
      %v593 = vmax.f32 %v356, %v433
      %v594 = vmax.f32 %v358, %v435
      %v595 = vmax.f32 %v504, %v581
      %v596 = vmax.f32 %v506, %v583
      %v597 = vmax.f32 %v510, %v587
      %v598 = vmax.f32 %v512, %v589
      %v599 = vmax.f32 %v591, %v595
      %v600 = vmax.f32 %v592, %v596
      %v601 = vmax.f32 %v593, %v597
      %v602 = vmax.f32 %v594, %v598
      %v603 = vld [vmem:[%s2] sm:$0xff]
      %v604 = vld [vmem:[%s2 + $0x8] sm:$0xff]
      %606 = vset.pattern.permute.xlu0 0
      %607 = vperm.xlu0 %606, %v603
      %v608 = vpop.permute.xlu0 %607
      %611 = vset.pattern.permute.xlu0 0
      %612 = vperm.xlu0 %611, %v604
      %v613 = vpop.permute.xlu0 %612
      %v615 = vadd.f32 %v599, %v608
      %v616 = vadd.f32 %v600, %v608
      %v617 = vadd.f32 %v601, %v613
      %v618 = vadd.f32 %v602, %v613
      %v619 = vmax.f32 %v615, 0.0
      %v620 = vmax.f32 %v616, 0.0
      %v621 = vmax.f32 %v617, 0.0
      %v622 = vmax.f32 %v618, 0.0
      %v623 = vld [vmem:[%s3] sm:$0xff]
      %v624 = vld [vmem:[%s3 + $0x8] sm:$0x3]
      %v625 = vld [vmem:[%s4] sm:$0xff]
      %v626 = vld [vmem:[%s4 + $0x8] sm:$0x3]
      %628 = vset.pattern.permute.xlu0 0
      %629 = vperm.xlu0 %628, %v625
      %v630 = vpop.permute.xlu0 %629
      %633 = vset.pattern.permute.xlu0 0
      %634 = vperm.xlu0 %633, %v626
      %v635 = vpop.permute.xlu0 %634
      %vm637 = vcmask 130048
      %v639 = vsel %vm637, %v623, 0
      %v642 = vsel %vm637, %v624, 0
      %644 = vmatprep.subr.mxu0 %v620
      %645 = vmatpush1.msra.mxu0 %v619
      %646 = vmatprep.subr.mxu0 %v622
      %647 = vmatpush1.msra.mxu0 %v621
      %648 = vmatprep.subr.mxu0 0.0
      %649 = vmatpush1.msra.mxu0 0.0
      %650 = vmatprep.subr.mxu0 0.0
      %651 = vmatpush1.msra.mxu0 0.0
      %652 = vmatprep.subr.mxu0 0.0
      %653 = vmatpush1.msra.mxu0 0.0
      %654 = vmatprep.subr.mxu0 0.0
      %655 = vmatpush1.msra.mxu0 0.0
      %656 = vmatprep.subr.mxu0 0.0
      %657 = vmatpush1.msra.mxu0 0.0
      %658 = vmatprep.subr.mxu0 0.0
      %659 = vmatpush1.msra.mxu0 0.0
      %660 = vmatprep.subr.mxu0 0.0
      %661 = vmatpush1.msra.mxu0 0.0
      %662 = vmatprep.subr.mxu0 0.0
      %663 = vmatpush1.msra.mxu0 0.0
      %664 = vmatprep.subr.mxu0 0.0
      %665 = vmatpush1.msra.mxu0 0.0
      %666 = vmatprep.subr.mxu0 0.0
      %667 = vmatpush1.msra.mxu0 0.0
      %668 = vmatprep.subr.mxu0 0.0
      %669 = vmatpush1.msra.mxu0 0.0
      %670 = vmatprep.subr.mxu0 0.0
      %671 = vmatpush1.msra.mxu0 0.0
      %672 = vmatprep.subr.mxu0 0.0
      %673 = vmatpush1.msra.mxu0 0.0
      %674 = vmatprep.subr.mxu0 0.0
      %675 = vmatpush1.msra.mxu0 0.0
      %676 = vmatprep.subr.mxu0 0.0
      %677 = vmatpush1.msra.mxu0 0.0
      %678 = vmatprep.subr.mxu0 0.0
      %679 = vmatpush1.msra.mxu0 0.0
      %680 = vmatprep.subr.mxu0 0.0
      %681 = vmatpush1.msra.mxu0 0.0
      %682 = vmatprep.subr.mxu0 0.0
      %683 = vmatpush1.msra.mxu0 0.0
      %684 = vmatprep.subr.mxu0 0.0
      %685 = vmatpush1.msra.mxu0 0.0
      %686 = vmatprep.subr.mxu0 0.0
      %687 = vmatpush1.msra.mxu0 0.0
      %688 = vmatprep.subr.mxu0 0.0
      %689 = vmatpush1.msra.mxu0 0.0
      %690 = vmatprep.subr.mxu0 0.0
      %691 = vmatpush1.msra.mxu0 0.0
      %692 = vmatprep.subr.mxu0 0.0
      %693 = vmatpush1.msra.mxu0 0.0
      %694 = vmatprep.subr.mxu0 0.0
      %695 = vmatpush1.msra.mxu0 0.0
      %696 = vmatprep.subr.mxu0 0.0
      %697 = vmatpush1.msra.mxu0 0.0
      %698 = vmatprep.subr.mxu0 0.0
      %699 = vmatpush1.msra.mxu0 0.0
      %700 = vmatprep.subr.mxu0 0.0
      %701 = vmatpush1.msra.mxu0 0.0
      %702 = vmatprep.subr.mxu0 0.0
      %703 = vmatpush1.msra.mxu0 0.0
      %704 = vmatprep.subr.mxu0 0.0
      %705 = vmatpush1.msra.mxu0 0.0
      %706 = vmatprep.subr.mxu0 0.0
      %707 = vmatpush1.msra.mxu0 0.0
      %708 = vmatprep.mubr.f32.mxu0 0.0
      %709 = vmatmul.mubr.f32.gmra.mrb[0].mxu0 %v639
      %v710 = vpop.f32.mrb[0].mxu0
      %v711 = vadd.f32 %v630, %v710
      %v712 = vpop.f32.mrb[0].mxu0
      %v713 = vadd.f32 %v630, %v712
      %714 = vmatprep.mubr.f32.mxu0 0.0
      %715 = vmatmul.mubr.f32.gmra.mrb[0].mxu0 %v642
      %v716 = vpop.f32.mrb[0].mxu0
      %v717 = vadd.f32 %v635, %v716
      %v718 = vpop.f32.mrb[0].mxu0
      %v719 = vadd.f32 %v635, %v718
      %720 = vdwg.mxu0
      %721 = vst [vmem:[%s224] sm:$0xff] %v711
      %722 = vst [vmem:[%s224 + $0x8] sm:$0xff] %v713
      %723 = vst [vmem:[%s224 + $0x10] sm:$0x3] %v717
      %724 = vst [vmem:[%s224 + $0x18] sm:$0x3] %v719
      %p725 = scmp.lt.s32.totalorder %s16, 1
      %s726 = scalar_select %p725, %s16, 1
      %s727 = smul.addr %s726, 4
      %s728 = smul.addr %s727, 8
      %s729 = scalar_lea.vmem %s5, %s728
      // Predicated region
      $region41: #{tpu_custom_call.1} parent=39 // pred_check
        %p730 = pneg %p144
      $region42: #{tpu_custom_call.1} parent=39 // pred_check_branch
        %732 = sbr.rel (%p730) target = $region44
      $region43: #{tpu_custom_call.1} parent=39 // pred_region
        _
      $region44: #{tpu_custom_call.1} parent=39 // pred_fallthru
        _
    $region40: #{tpu_custom_call.1} parent=5 // pred_fallthru
      _
    %p733 = scmp.le.s32.totalorder 2, %s11
    // Predicated region
    $region45: #{tpu_custom_call.1} parent=5 // pred_check
      %p734 = pneg %p733
    $region46: #{tpu_custom_call.1} parent=5 // pred_check_branch
      %736 = sbr.rel (%p734) target = $region48
    $region47: #{tpu_custom_call.1} parent=5 // pred_region
      %s737 = ssub.s32 %s11, 2
      // Predicated region
      $region49: #{tpu_custom_call.1} parent=47 // pred_check
        %p738 = pneg %p150
      $region50: #{tpu_custom_call.1} parent=47 // pred_check_branch
        %740 = sbr.rel (%p738) target = $region52
      $region51: #{tpu_custom_call.1} parent=47 // pred_region
        %p741 = scmp.lt.s32.totalorder %s17, 1
        %s742 = scalar_select %p741, %s17, 1
        %s743 = smul.addr %s742, 4
        %s744 = smul.addr %s743, 8
        %s745 = scalar_lea.vmem %s5, %s744
      $region52: #{tpu_custom_call.1} parent=47 // pred_fallthru
        _
    $region48: #{tpu_custom_call.1} parent=5 // pred_fallthru
      _
  $region6: #{tpu_custom_call.1} parent=0 // loop_footer
    %s15 = sadd.s32 1, %s11
  $region7: #{tpu_custom_call.1} parent=0 // loop_footer_branch
    %10 = sbr.rel target = $region3
  $region8: #{tpu_custom_call.1} parent=0 // loop_exit
    _

</llo_original>
